<compile_context>
chip_gen: v7x
topology: tpu7x:2x2x1
jax: 0.10.0
libtpu: 0.0.40
codegen_flags: <defaults>
</compile_context>

<pallas_src>
import jax
import jax.numpy as jnp
from jax.experimental import pallas as pl
from jax.experimental.pallas import tpu as pltpu

ALPHA = 3.0


# ---------------------------------------------------------------------------
# Fused kernel: embedding gather + adjacency construction + per-head mixing.
#   idx_ref  : (N, 1)  int32   node indices
#   embs_ref : (2, nnodes, D)  stacked emb1 / emb2 tables
#   wb_ref   : (2, D+1, D)     stacked [W ; b] for lin1 / lin2
#   w_ref    : (B, L, G)       per-head mixing weights (L == N)
#   x_ref    : (B, L, Sx)      input (original layout, no wrapper transpose)
#   v_ref    : (B, Sx, G)      output V, emitted directly in final layout
# ---------------------------------------------------------------------------
def _global_attn2_kernel(idx_ref, embs_ref, wb_ref, w_ref, x_ref, v_ref):
    f32 = jnp.float32
    N = idx_ref.shape[0]
    nnodes = embs_ref.shape[1]
    D = embs_ref.shape[2]
    B = w_ref.shape[0]

    # Embedding gather as a one-hot matmul (MXU-friendly, no dynamic slicing).
    onehot = (idx_ref[...] ==
              jax.lax.broadcasted_iota(jnp.int32, (N, nnodes), 1)).astype(f32)
    e1 = jnp.dot(onehot, embs_ref[0], preferred_element_type=f32)   # (N, D)
    e2 = jnp.dot(onehot, embs_ref[1], preferred_element_type=f32)   # (N, D)

    # Static ref views into the packed weight/bias slabs (zero runtime cost).
    w1 = wb_ref[0, :D, :]
    b1 = wb_ref[0, D:, :]
    w2 = wb_ref[1, :D, :]
    b2 = wb_ref[1, D:, :]

    nv1 = jnp.tanh(ALPHA * (jnp.dot(e1, w1, preferred_element_type=f32) + b1))
    nv2 = jnp.tanh(ALPHA * (jnp.dot(e2, w2, preferred_element_type=f32) + b2))

    # m1 = nv1 @ nv2.T ; adj = tanh(a*(m1 - m1.T)) so adj.T = tanh(a*(m1.T - m1)).
    # Single MXU dot + one in-vreg (N,N) transpose (XLU slot, MXU/VPU idle).
    m1 = jax.lax.dot_general(nv1, nv2, (((1,), (1,)), ((), ())),
                             preferred_element_type=f32)            # (L, S)
    adj_t = jnp.tanh(ALPHA * (m1.T - m1))                           # (S, L) == adj.T

    # Static unroll over heads (B is tiny); adj_t stays resident in vregs.
    for b in range(B):
        # scores[b] = adj.T @ W[b]  — contraction on adj_t's LAST dim (MXU native)
        scores = jnp.dot(adj_t, w_ref[b], preferred_element_type=f32)  # (S, G)
        m = jnp.max(scores, axis=-1, keepdims=True)
        p = jnp.exp(scores - m)
        series = p / jnp.sum(p, axis=-1, keepdims=True)                # (S, G), exact
        # V[b] = x[b].T @ series : contract dim 0 of x[b] against dim 0 of series.
        v_b = jax.lax.dot_general(x_ref[b], series, (((0,), (0,)), ((), ())),
                                  preferred_element_type=f32)          # (Sx, G)
        v_ref[b] = v_b.astype(v_ref.dtype)


def pack_params(params):
    """One-time packing of the 7 small parameter tensors into 3 kernel operands."""
    embs = jnp.stack([params["emb1"], params["emb2"]])              # (2, nnodes, D)
    wb = jnp.stack([
        jnp.concatenate([params["lin1_w"], params["lin1_b"]], axis=0),
        jnp.concatenate([params["lin2_w"], params["lin2_b"]], axis=0),
    ])                                                              # (2, D+1, D)
    return {"embs": embs, "wb": wb, "W": params["W"]}


def global_attention2_forward(packed, idx, x):
    """x: (B, L, Sx); returns (V of shape (B, Sx, G), None).

    queries/keys/values/attn_mask of the original module are unused by its
    forward pass and therefore omitted here.
    """
    embs, wb, W = packed["embs"], packed["wb"], packed["W"]
    B, L, G = W.shape
    _, _, Sx = x.shape
    N = idx.shape[0]
    idx2d = idx.reshape(N, 1).astype(jnp.int32)

    vmem = pltpu.MemorySpace.VMEM
    V = pl.pallas_call(
        _global_attn2_kernel,
        out_shape=jax.ShapeDtypeStruct((B, Sx, G), jnp.float32),
        # No grid: single invocation on whole arrays resident in VMEM — no inert
        # double-buffering / grid-loop scaffolding for a (1,) grid.
        in_specs=[
            pl.BlockSpec(memory_space=vmem),   # idx  (N, 1) int32
            pl.BlockSpec(memory_space=vmem),   # embs (2, nnodes, D)
            pl.BlockSpec(memory_space=vmem),   # wb   (2, D+1, D)
            pl.BlockSpec(memory_space=vmem),   # W    (B, L, G)
            pl.BlockSpec(memory_space=vmem),   # x    (B, L, Sx)
        ],
        out_specs=pl.BlockSpec(memory_space=vmem),
    )(idx2d, embs, wb, W, x)
    return V, None                              # output_attention=False


# pure-JAX reference for correctness checking
def reference_forward(params, idx, x):
    e1 = params["emb1"][idx]
    e2 = params["emb2"][idx]
    nv1 = jnp.tanh(ALPHA * (e1 @ params["lin1_w"] + params["lin1_b"][0]))
    nv2 = jnp.tanh(ALPHA * (e2 @ params["lin2_w"] + params["lin2_b"][0]))
    adj = jnp.tanh(ALPHA * (nv1 @ nv2.T - nv2 @ nv1.T))
    scores = jnp.einsum("ls,blg->bsg", adj, params["W"])
    series = jax.nn.softmax(scores, axis=-1)
    V = jnp.einsum("bls,blg->bsg", x, series)
    return V


if __name__ == "__main__":
    # small shapes consistent with the module
    nsensor = 8        # N (== L == S of adj)
    emb_dim = 16       # embedding_dim
    n_group = 8        # G
    n_heads = 2        # B (batch of x equals n_heads for the einsums)
    seq = 16           # last dim of x ('s' in 'bls')

    key = jax.random.PRNGKey(0)
    ks = jax.random.split(key, 8)
    params = {
        "emb1":   jax.random.normal(ks[0], (nsensor, emb_dim), jnp.float32),
        "emb2":   jax.random.normal(ks[1], (nsensor, emb_dim), jnp.float32),
        # linear weights stored as (in, out) so the kernel does x @ W + b
        "lin1_w": jax.random.normal(ks[2], (emb_dim, emb_dim), jnp.float32) * 0.1,
        "lin1_b": jax.random.normal(ks[3], (1, emb_dim), jnp.float32) * 0.1,
        "lin2_w": jax.random.normal(ks[4], (emb_dim, emb_dim), jnp.float32) * 0.1,
        "lin2_b": jax.random.normal(ks[5], (1, emb_dim), jnp.float32) * 0.1,
        "W":      jax.random.normal(ks[6], (n_heads, nsensor, n_group), jnp.float32),
    }

    idx = jnp.arange(nsensor, dtype=jnp.int32)
    x = jax.random.normal(ks[7], (n_heads, nsensor, seq), jnp.float32)

    packed = pack_params(params)                 # one-time, outside the forward
    V, _ = global_attention2_forward(packed, idx, x)
    V = jax.block_until_ready(V)

    V_ref = reference_forward(params, idx, x)
    assert V.shape == (n_heads, seq, n_group), V.shape
    # exact softmax divide now -> tight tolerance
    assert jnp.allclose(V, V_ref, atol=1e-4, rtol=1e-4), "mismatch vs reference"

    print("KERNEL_OK")
</pallas_src>

<mosaic_0001>
module attributes {stable_mosaic.version = 11 : i64} {
  func.func @_global_attn2_kernel(%arg0: memref<8x1xi32, #tpu.memory_space<vmem>>, %arg1: memref<2x8x16xf32, #tpu.memory_space<vmem>>, %arg2: memref<2x17x16xf32, #tpu.memory_space<vmem>>, %arg3: memref<2x8x8xf32, #tpu.memory_space<vmem>>, %arg4: memref<2x8x16xf32, #tpu.memory_space<vmem>>, %arg5: memref<2x16x8xf32, #tpu.memory_space<vmem>>) attributes {dimension_semantics = [], scalar_prefetch = 0 : i64, scratch_operands = 0 : i64, tpu.core_type = #tpu.core_type<tc>} {
    %c0 = arith.constant 0 : index
    %c0_0 = arith.constant 0 : index
    %0 = vector.load %arg0[%c0, %c0_0] : memref<8x1xi32, #tpu.memory_space<vmem>>, vector<8x1xi32>
    %1 = tpu.iota {dimensions = array<i32: 1>} : vector<8x8xi32>
    %2 = vector.broadcast %0 : vector<8x1xi32> to vector<8x8xi32>
    %3 = arith.cmpi eq, %2, %1 : vector<8x8xi32>
    %4 = arith.extui %3 : vector<8x8xi1> to vector<8x8xi32>
    %5 = arith.sitofp %4 : vector<8x8xi32> to vector<8x8xf32>
    %c0_1 = arith.constant 0 : index
    %c0_2 = arith.constant 0 : index
    %c0_3 = arith.constant 0 : index
    %6 = vector.load %arg1[%c0_1, %c0_2, %c0_3] : memref<2x8x16xf32, #tpu.memory_space<vmem>>, vector<1x8x16xf32>
    %7 = vector.shape_cast %6 : vector<1x8x16xf32> to vector<8x16xf32>
    %cst = arith.constant dense<0.000000e+00> : vector<8x16xf32>
    %8 = tpu.matmul %5, %7, %cst {dimension_numbers = #tpu.dot_dimension_numbers<[1], [0], [0], [1], [0, 0, 1, 1], [], []>} : vector<8x8xf32>, vector<8x16xf32>, vector<8x16xf32> -> vector<8x16xf32>
    %c1 = arith.constant 1 : index
    %c0_4 = arith.constant 0 : index
    %c0_5 = arith.constant 0 : index
    %9 = vector.load %arg1[%c1, %c0_4, %c0_5] : memref<2x8x16xf32, #tpu.memory_space<vmem>>, vector<1x8x16xf32>
    %10 = vector.shape_cast %9 : vector<1x8x16xf32> to vector<8x16xf32>
    %cst_6 = arith.constant dense<0.000000e+00> : vector<8x16xf32>
    %11 = tpu.matmul %5, %10, %cst_6 {dimension_numbers = #tpu.dot_dimension_numbers<[1], [0], [0], [1], [0, 0, 1, 1], [], []>} : vector<8x8xf32>, vector<8x16xf32>, vector<8x16xf32> -> vector<8x16xf32>
    %c0_7 = arith.constant 0 : index
    %c0_8 = arith.constant 0 : index
    %c0_9 = arith.constant 0 : index
    %12 = vector.load %arg2[%c0_7, %c0_8, %c0_9] : memref<2x17x16xf32, #tpu.memory_space<vmem>>, vector<1x16x16xf32>
    %13 = vector.shape_cast %12 : vector<1x16x16xf32> to vector<16x16xf32>
    %c0_10 = arith.constant 0 : index
    %c16 = arith.constant 16 : index
    %c0_11 = arith.constant 0 : index
    %14 = vector.load %arg2[%c0_10, %c16, %c0_11] : memref<2x17x16xf32, #tpu.memory_space<vmem>>, vector<1x1x16xf32>
    %15 = vector.shape_cast %14 : vector<1x1x16xf32> to vector<1x16xf32>
    %c1_12 = arith.constant 1 : index
    %c0_13 = arith.constant 0 : index
    %c0_14 = arith.constant 0 : index
    %16 = vector.load %arg2[%c1_12, %c0_13, %c0_14] : memref<2x17x16xf32, #tpu.memory_space<vmem>>, vector<1x16x16xf32>
    %17 = vector.shape_cast %16 : vector<1x16x16xf32> to vector<16x16xf32>
    %c1_15 = arith.constant 1 : index
    %c16_16 = arith.constant 16 : index
    %c0_17 = arith.constant 0 : index
    %18 = vector.load %arg2[%c1_15, %c16_16, %c0_17] : memref<2x17x16xf32, #tpu.memory_space<vmem>>, vector<1x1x16xf32>
    %19 = vector.shape_cast %18 : vector<1x1x16xf32> to vector<1x16xf32>
    %cst_18 = arith.constant dense<0.000000e+00> : vector<8x16xf32>
    %20 = tpu.matmul %8, %13, %cst_18 {dimension_numbers = #tpu.dot_dimension_numbers<[1], [0], [0], [1], [0, 0, 1, 1], [], []>} : vector<8x16xf32>, vector<16x16xf32>, vector<8x16xf32> -> vector<8x16xf32>
    %21 = vector.broadcast %15 : vector<1x16xf32> to vector<8x16xf32>
    %22 = arith.addf %20, %21 : vector<8x16xf32>
    %cst_19 = arith.constant 3.000000e+00 : f32
    %23 = vector.broadcast %cst_19 : f32 to vector<8x16xf32>
    %24 = arith.mulf %23, %22 : vector<8x16xf32>
    %25 = math.tanh %24 : vector<8x16xf32>
    %cst_20 = arith.constant dense<0.000000e+00> : vector<8x16xf32>
    %26 = tpu.matmul %11, %17, %cst_20 {dimension_numbers = #tpu.dot_dimension_numbers<[1], [0], [0], [1], [0, 0, 1, 1], [], []>} : vector<8x16xf32>, vector<16x16xf32>, vector<8x16xf32> -> vector<8x16xf32>
    %27 = vector.broadcast %19 : vector<1x16xf32> to vector<8x16xf32>
    %28 = arith.addf %26, %27 : vector<8x16xf32>
    %cst_21 = arith.constant 3.000000e+00 : f32
    %29 = vector.broadcast %cst_21 : f32 to vector<8x16xf32>
    %30 = arith.mulf %29, %28 : vector<8x16xf32>
    %31 = math.tanh %30 : vector<8x16xf32>
    %cst_22 = arith.constant dense<0.000000e+00> : vector<8x8xf32>
    %32 = tpu.matmul %25, %31, %cst_22 {dimension_numbers = #tpu.dot_dimension_numbers<[1], [1], [0], [0], [0, 0, 1, 0], [], []>} : vector<8x16xf32>, vector<8x16xf32>, vector<8x8xf32> -> vector<8x8xf32>
    %33 = tpu.transpose %32, [1, 0] : vector<8x8xf32> -> vector<8x8xf32>
    %34 = arith.subf %33, %32 : vector<8x8xf32>
    %cst_23 = arith.constant 3.000000e+00 : f32
    %35 = vector.broadcast %cst_23 : f32 to vector<8x8xf32>
    %36 = arith.mulf %35, %34 : vector<8x8xf32>
    %37 = math.tanh %36 : vector<8x8xf32>
    %c0_24 = arith.constant 0 : index
    %c0_25 = arith.constant 0 : index
    %c0_26 = arith.constant 0 : index
    %38 = vector.load %arg3[%c0_24, %c0_25, %c0_26] : memref<2x8x8xf32, #tpu.memory_space<vmem>>, vector<1x8x8xf32>
    %39 = vector.shape_cast %38 : vector<1x8x8xf32> to vector<8x8xf32>
    %cst_27 = arith.constant dense<0.000000e+00> : vector<8x8xf32>
    %40 = tpu.matmul %37, %39, %cst_27 {dimension_numbers = #tpu.dot_dimension_numbers<[1], [0], [0], [1], [0, 0, 1, 1], [], []>} : vector<8x8xf32>, vector<8x8xf32>, vector<8x8xf32> -> vector<8x8xf32>
    %cst_28 = arith.constant dense<0xFF800000> : vector<8xf32>
    %41 = vector.multi_reduction <maximumf>, %40, %cst_28 [1] : vector<8x8xf32> to vector<8xf32>
    %42 = vector.shape_cast %41 : vector<8xf32> to vector<8x1xf32>
    %43 = vector.broadcast %42 : vector<8x1xf32> to vector<8x8xf32>
    %44 = arith.subf %40, %43 : vector<8x8xf32>
    %45 = math.exp %44 : vector<8x8xf32>
    %cst_29 = arith.constant dense<0.000000e+00> : vector<8xf32>
    %46 = vector.multi_reduction <add>, %45, %cst_29 [1] : vector<8x8xf32> to vector<8xf32>
    %47 = vector.shape_cast %46 : vector<8xf32> to vector<8x1xf32>
    %48 = vector.broadcast %47 : vector<8x1xf32> to vector<8x8xf32>
    %49 = arith.divf %45, %48 : vector<8x8xf32>
    %c0_30 = arith.constant 0 : index
    %c0_31 = arith.constant 0 : index
    %c0_32 = arith.constant 0 : index
    %50 = vector.load %arg4[%c0_30, %c0_31, %c0_32] : memref<2x8x16xf32, #tpu.memory_space<vmem>>, vector<1x8x16xf32>
    %51 = vector.shape_cast %50 : vector<1x8x16xf32> to vector<8x16xf32>
    %cst_33 = arith.constant dense<0.000000e+00> : vector<16x8xf32>
    %52 = tpu.matmul %51, %49, %cst_33 {dimension_numbers = #tpu.dot_dimension_numbers<[0], [0], [1], [1], [0, 1, 1, 1], [], []>} : vector<8x16xf32>, vector<8x8xf32>, vector<16x8xf32> -> vector<16x8xf32>
    %c0_34 = arith.constant 0 : index
    %c0_35 = arith.constant 0 : index
    %c0_36 = arith.constant 0 : index
    %53 = vector.load %arg5[%c0_34, %c0_35, %c0_36] : memref<2x16x8xf32, #tpu.memory_space<vmem>>, vector<1x16x8xf32>
    %54 = vector.shape_cast %53 : vector<1x16x8xf32> to vector<16x8xf32>
    %55 = vector.shape_cast %52 : vector<16x8xf32> to vector<1x16x8xf32>
    tpu.vector_store %arg5[%c0_34, %c0_35, %c0_36], %55 {strides = array<i32>} : memref<2x16x8xf32, #tpu.memory_space<vmem>>, vector<1x16x8xf32>,
    %c1_37 = arith.constant 1 : index
    %c0_38 = arith.constant 0 : index
    %c0_39 = arith.constant 0 : index
    %56 = vector.load %arg3[%c1_37, %c0_38, %c0_39] : memref<2x8x8xf32, #tpu.memory_space<vmem>>, vector<1x8x8xf32>
    %57 = vector.shape_cast %56 : vector<1x8x8xf32> to vector<8x8xf32>
    %cst_40 = arith.constant dense<0.000000e+00> : vector<8x8xf32>
    %58 = tpu.matmul %37, %57, %cst_40 {dimension_numbers = #tpu.dot_dimension_numbers<[1], [0], [0], [1], [0, 0, 1, 1], [], []>} : vector<8x8xf32>, vector<8x8xf32>, vector<8x8xf32> -> vector<8x8xf32>
    %cst_41 = arith.constant dense<0xFF800000> : vector<8xf32>
    %59 = vector.multi_reduction <maximumf>, %58, %cst_41 [1] : vector<8x8xf32> to vector<8xf32>
    %60 = vector.shape_cast %59 : vector<8xf32> to vector<8x1xf32>
    %61 = vector.broadcast %60 : vector<8x1xf32> to vector<8x8xf32>
    %62 = arith.subf %58, %61 : vector<8x8xf32>
    %63 = math.exp %62 : vector<8x8xf32>
    %cst_42 = arith.constant dense<0.000000e+00> : vector<8xf32>
    %64 = vector.multi_reduction <add>, %63, %cst_42 [1] : vector<8x8xf32> to vector<8xf32>
    %65 = vector.shape_cast %64 : vector<8xf32> to vector<8x1xf32>
    %66 = vector.broadcast %65 : vector<8x1xf32> to vector<8x8xf32>
    %67 = arith.divf %63, %66 : vector<8x8xf32>
    %c1_43 = arith.constant 1 : index
    %c0_44 = arith.constant 0 : index
    %c0_45 = arith.constant 0 : index
    %68 = vector.load %arg4[%c1_43, %c0_44, %c0_45] : memref<2x8x16xf32, #tpu.memory_space<vmem>>, vector<1x8x16xf32>
    %69 = vector.shape_cast %68 : vector<1x8x16xf32> to vector<8x16xf32>
    %cst_46 = arith.constant dense<0.000000e+00> : vector<16x8xf32>
    %70 = tpu.matmul %69, %67, %cst_46 {dimension_numbers = #tpu.dot_dimension_numbers<[0], [0], [1], [1], [0, 1, 1, 1], [], []>} : vector<8x16xf32>, vector<8x8xf32>, vector<16x8xf32> -> vector<16x8xf32>
    %c1_47 = arith.constant 1 : index
    %c0_48 = arith.constant 0 : index
    %c0_49 = arith.constant 0 : index
    %71 = vector.load %arg5[%c1_47, %c0_48, %c0_49] : memref<2x16x8xf32, #tpu.memory_space<vmem>>, vector<1x16x8xf32>
    %72 = vector.shape_cast %71 : vector<1x16x8xf32> to vector<16x8xf32>
    %73 = vector.shape_cast %70 : vector<16x8xf32> to vector<1x16x8xf32>
    tpu.vector_store %arg5[%c1_47, %c0_48, %c0_49], %73 {strides = array<i32>} : memref<2x16x8xf32, #tpu.memory_space<vmem>>, vector<1x16x8xf32>,
    return
  }
}

</mosaic_0001>

<llo_original>
// kernel: tpu_custom_call.1
$region0: #{tpu_custom_call.1}
  #allocation0 [shape = 'u32[]', space=smem, size = 0x4, offset = 0x4, fixed_abs, tag = 'smem constant byte address 0x4 - core index']
  #allocation1 [shape = 'u32[144,128]{1,0:T(1,128)}', space=vmem, size = 0x12000, scoped, tag = 'internal scratch']
  %s0 = inlined_call_operand.vmem [shape: s32[8,1], index: 0, kind: input, shape index: {}]
  %s1 = inlined_call_operand.vmem [shape: f32[2,8,16], index: 1, kind: input, shape index: {}]
  %s2 = inlined_call_operand.vmem [shape: f32[2,17,16], index: 2, kind: input, shape index: {}]
  %s3 = inlined_call_operand.vmem [shape: f32[2,8,8], index: 3, kind: input, shape index: {}]
  %s4 = inlined_call_operand.vmem [shape: f32[2,8,16], index: 4, kind: input, shape index: {}]
  %s5 = inlined_call_operand.vmem [shape: f32[2,16,8], index: 5, kind: output, shape index: {}]
  %s6 = sld [smem:[#allocation0]]
  $region30: #{tpu_custom_call.1} parent=0
    _
  %s8 = ssub.s32 1, %s6
  %s9 = scalar_select 0, %s8, %s6
  // Predicated region
  $region2: #{tpu_custom_call.1} parent=0 // pred_check
    _
  $region3: #{tpu_custom_call.1} parent=0 // pred_check_branch
    %11 = sbr.rel (0) target = $region5
  $region4: #{tpu_custom_call.1} parent=0 // pred_region
    _
  $region5: #{tpu_custom_call.1} parent=0 // pred_fallthru
    _
  // Predicated region
  $region6: #{tpu_custom_call.1} parent=0 // pred_check
    _
  $region7: #{tpu_custom_call.1} parent=0 // pred_check_branch
    %13 = sbr.rel (0) target = $region9
  $region8: #{tpu_custom_call.1} parent=0 // pred_region
    _
  $region9: #{tpu_custom_call.1} parent=0 // pred_fallthru
    _
  // Predicated region
  $region10: #{tpu_custom_call.1} parent=0 // pred_check
    _
  $region11: #{tpu_custom_call.1} parent=0 // pred_check_branch
    %15 = sbr.rel (0) target = $region13
  $region12: #{tpu_custom_call.1} parent=0 // pred_region
    _
  $region13: #{tpu_custom_call.1} parent=0 // pred_fallthru
    _
  // Predicated region
  $region14: #{tpu_custom_call.1} parent=0 // pred_check
    _
  $region15: #{tpu_custom_call.1} parent=0 // pred_check_branch
    %17 = sbr.rel (0) target = $region17
  $region16: #{tpu_custom_call.1} parent=0 // pred_region
    _
  $region17: #{tpu_custom_call.1} parent=0 // pred_fallthru
    _
  // Predicated region
  $region18: #{tpu_custom_call.1} parent=0 // pred_check
    _
  $region19: #{tpu_custom_call.1} parent=0 // pred_check_branch
    %19 = sbr.rel (0) target = $region21
  $region20: #{tpu_custom_call.1} parent=0 // pred_region
    _
  $region21: #{tpu_custom_call.1} parent=0 // pred_fallthru
    _
  %v20 = vld [vmem:[%s0] sm:$0xff]
  %v21 = vlaneseq
  %v22 = vand.u32 %v21, 127
  %23 = vset.pattern.permute.xlu0 0
  %24 = vperm.xlu0 %23, %v20
  %v25 = vpop.permute.xlu0 %24
  %vm26 = vcmp.eq.s32.totalorder %v25, %v22
  %v27 = vsel %vm26, 1, 0
  %v28 = vcvt.s32.f32 %v27
  %v29 = vld [vmem:[%s1] sm:$0xff]
  %vm30 = vcmask 64512
  %v32 = vsel %vm30, %v28, 0
  %34 = vmatprep.subr.mxu0 0.0
  %35 = vmatpush1.msra.mxu0 %v29
  %36 = vmatprep.subr.mxu0 0.0
  %37 = vmatpush1.msra.mxu0 0.0
  %38 = vmatprep.subr.mxu0 0.0
  %39 = vmatpush1.msra.mxu0 0.0
  %40 = vmatprep.subr.mxu0 0.0
  %41 = vmatpush1.msra.mxu0 0.0
  %42 = vmatprep.subr.mxu0 0.0
  %43 = vmatpush1.msra.mxu0 0.0
  %44 = vmatprep.subr.mxu0 0.0
  %45 = vmatpush1.msra.mxu0 0.0
  %46 = vmatprep.subr.mxu0 0.0
  %47 = vmatpush1.msra.mxu0 0.0
  %48 = vmatprep.subr.mxu0 0.0
  %49 = vmatpush1.msra.mxu0 0.0
  %50 = vmatprep.subr.mxu0 0.0
  %51 = vmatpush1.msra.mxu0 0.0
  %52 = vmatprep.subr.mxu0 0.0
  %53 = vmatpush1.msra.mxu0 0.0
  %54 = vmatprep.subr.mxu0 0.0
  %55 = vmatpush1.msra.mxu0 0.0
  %56 = vmatprep.subr.mxu0 0.0
  %57 = vmatpush1.msra.mxu0 0.0
  %58 = vmatprep.subr.mxu0 0.0
  %59 = vmatpush1.msra.mxu0 0.0
  %60 = vmatprep.subr.mxu0 0.0
  %61 = vmatpush1.msra.mxu0 0.0
  %62 = vmatprep.subr.mxu0 0.0
  %63 = vmatpush1.msra.mxu0 0.0
  %64 = vmatprep.subr.mxu0 0.0
  %65 = vmatpush1.msra.mxu0 0.0
  %66 = vmatprep.subr.mxu0 0.0
  %67 = vmatpush1.msra.mxu0 0.0
  %68 = vmatprep.subr.mxu0 0.0
  %69 = vmatpush1.msra.mxu0 0.0
  %70 = vmatprep.subr.mxu0 0.0
  %71 = vmatpush1.msra.mxu0 0.0
  %72 = vmatprep.subr.mxu0 0.0
  %73 = vmatpush1.msra.mxu0 0.0
  %74 = vmatprep.subr.mxu0 0.0
  %75 = vmatpush1.msra.mxu0 0.0
  %76 = vmatprep.subr.mxu0 0.0
  %77 = vmatpush1.msra.mxu0 0.0
  %78 = vmatprep.subr.mxu0 0.0
  %79 = vmatpush1.msra.mxu0 0.0
  %80 = vmatprep.subr.mxu0 0.0
  %81 = vmatpush1.msra.mxu0 0.0
  %82 = vmatprep.subr.mxu0 0.0
  %83 = vmatpush1.msra.mxu0 0.0
  %84 = vmatprep.subr.mxu0 0.0
  %85 = vmatpush1.msra.mxu0 0.0
  %86 = vmatprep.subr.mxu0 0.0
  %87 = vmatpush1.msra.mxu0 0.0
  %88 = vmatprep.subr.mxu0 0.0
  %89 = vmatpush1.msra.mxu0 0.0
  %90 = vmatprep.subr.mxu0 0.0
  %91 = vmatpush1.msra.mxu0 0.0
  %92 = vmatprep.subr.mxu0 0.0
  %93 = vmatpush1.msra.mxu0 0.0
  %94 = vmatprep.subr.mxu0 0.0
  %95 = vmatpush1.msra.mxu0 0.0
  %96 = vmatprep.subr.mxu0 0.0
  %97 = vmatpush1.msra.mxu0 0.0
  %98 = vmatprep.mubr.f32.mxu0 0.0
  %99 = vmatmul.mubr.f32.gmra.mrb[0].mxu0 %v32
  %v100 = vpop.f32.mrb[0].mxu0
  %v101 = vadd.f32 0.0, %v100
  %v102 = vpop.f32.mrb[0].mxu0
  %103 = vdwg.mxu0
  %s104 = scalar_lea.vmem %s1, 8
  %v105 = vld [vmem:[%s104] sm:$0xff]
  %106 = vmatprep.subr.mxu0 0.0
  %107 = vmatpush1.msra.mxu0 %v105
  %108 = vmatprep.subr.mxu0 0.0
  %109 = vmatpush1.msra.mxu0 0.0
  %110 = vmatprep.subr.mxu0 0.0
  %111 = vmatpush1.msra.mxu0 0.0
  %112 = vmatprep.subr.mxu0 0.0
  %113 = vmatpush1.msra.mxu0 0.0
  %114 = vmatprep.subr.mxu0 0.0
  %115 = vmatpush1.msra.mxu0 0.0
  %116 = vmatprep.subr.mxu0 0.0
  %117 = vmatpush1.msra.mxu0 0.0
  %118 = vmatprep.subr.mxu0 0.0
  %119 = vmatpush1.msra.mxu0 0.0
  %120 = vmatprep.subr.mxu0 0.0
  %121 = vmatpush1.msra.mxu0 0.0
  %122 = vmatprep.subr.mxu0 0.0
  %123 = vmatpush1.msra.mxu0 0.0
  %124 = vmatprep.subr.mxu0 0.0
  %125 = vmatpush1.msra.mxu0 0.0
  %126 = vmatprep.subr.mxu0 0.0
  %127 = vmatpush1.msra.mxu0 0.0
  %128 = vmatprep.subr.mxu0 0.0
  %129 = vmatpush1.msra.mxu0 0.0
  %130 = vmatprep.subr.mxu0 0.0
  %131 = vmatpush1.msra.mxu0 0.0
  %132 = vmatprep.subr.mxu0 0.0
  %133 = vmatpush1.msra.mxu0 0.0
  %134 = vmatprep.subr.mxu0 0.0
  %135 = vmatpush1.msra.mxu0 0.0
  %136 = vmatprep.subr.mxu0 0.0
  %137 = vmatpush1.msra.mxu0 0.0
  %138 = vmatprep.subr.mxu0 0.0
  %139 = vmatpush1.msra.mxu0 0.0
  %140 = vmatprep.subr.mxu0 0.0
  %141 = vmatpush1.msra.mxu0 0.0
  %142 = vmatprep.subr.mxu0 0.0
  %143 = vmatpush1.msra.mxu0 0.0
  %144 = vmatprep.subr.mxu0 0.0
  %145 = vmatpush1.msra.mxu0 0.0
  %146 = vmatprep.subr.mxu0 0.0
  %147 = vmatpush1.msra.mxu0 0.0
  %148 = vmatprep.subr.mxu0 0.0
  %149 = vmatpush1.msra.mxu0 0.0
  %150 = vmatprep.subr.mxu0 0.0
  %151 = vmatpush1.msra.mxu0 0.0
  %152 = vmatprep.subr.mxu0 0.0
  %153 = vmatpush1.msra.mxu0 0.0
  %154 = vmatprep.subr.mxu0 0.0
  %155 = vmatpush1.msra.mxu0 0.0
  %156 = vmatprep.subr.mxu0 0.0
  %157 = vmatpush1.msra.mxu0 0.0
  %158 = vmatprep.subr.mxu0 0.0
  %159 = vmatpush1.msra.mxu0 0.0
  %160 = vmatprep.subr.mxu0 0.0
  %161 = vmatpush1.msra.mxu0 0.0
  %162 = vmatprep.subr.mxu0 0.0
  %163 = vmatpush1.msra.mxu0 0.0
  %164 = vmatprep.subr.mxu0 0.0
  %165 = vmatpush1.msra.mxu0 0.0
  %166 = vmatprep.subr.mxu0 0.0
  %167 = vmatpush1.msra.mxu0 0.0
  %168 = vmatprep.subr.mxu0 0.0
  %169 = vmatpush1.msra.mxu0 0.0
  %170 = vmatprep.mubr.f32.mxu0 0.0
  %171 = vmatmul.mubr.f32.gmra.mrb[0].mxu0 %v32
  %v172 = vpop.f32.mrb[0].mxu0
  %v173 = vadd.f32 0.0, %v172
  %v174 = vpop.f32.mrb[0].mxu0
  %175 = vdwg.mxu0
  %v176 = vld [vmem:[%s2] sm:$0xff]
  %v177 = vld [vmem:[%s2 + $0x8] sm:$0xff]
  %v178 = vld [vmem:[%s2 + $0x10] sm:$0x1]
  %s179 = scalar_lea.vmem %s2, 24
  %v180 = vld [vmem:[%s179] sm:$0xff]
  %v181 = vld [vmem:[%s179 + $0x8] sm:$0xff]
  %v182 = vld [vmem:[%s179 + $0x10] sm:$0x1]
  %v183 = vlaneseq
  %v184 = vshrl.u32 %v183, 7
  %v185 = vsub.s32 0, %v184
  %v186 = vrot.slane %v178, %v185
  %vm187 = vcmask 130048
  %v189 = vsel %vm187, %v101, 0
  %191 = vmatprep.subr.mxu0 0.0
  %192 = vmatpush1.msra.mxu0 %v176
  %193 = vmatprep.subr.mxu0 0.0
  %194 = vmatpush1.msra.mxu0 %v177
  %195 = vmatprep.subr.mxu0 0.0
  %196 = vmatpush1.msra.mxu0 0.0
  %197 = vmatprep.subr.mxu0 0.0
  %198 = vmatpush1.msra.mxu0 0.0
  %199 = vmatprep.subr.mxu0 0.0
  %200 = vmatpush1.msra.mxu0 0.0
  %201 = vmatprep.subr.mxu0 0.0
  %202 = vmatpush1.msra.mxu0 0.0
  %203 = vmatprep.subr.mxu0 0.0
  %204 = vmatpush1.msra.mxu0 0.0
  %205 = vmatprep.subr.mxu0 0.0
  %206 = vmatpush1.msra.mxu0 0.0
  %207 = vmatprep.subr.mxu0 0.0
  %208 = vmatpush1.msra.mxu0 0.0
  %209 = vmatprep.subr.mxu0 0.0
  %210 = vmatpush1.msra.mxu0 0.0
  %211 = vmatprep.subr.mxu0 0.0
  %212 = vmatpush1.msra.mxu0 0.0
  %213 = vmatprep.subr.mxu0 0.0
  %214 = vmatpush1.msra.mxu0 0.0
  %215 = vmatprep.subr.mxu0 0.0
  %216 = vmatpush1.msra.mxu0 0.0
  %217 = vmatprep.subr.mxu0 0.0
  %218 = vmatpush1.msra.mxu0 0.0
  %219 = vmatprep.subr.mxu0 0.0
  %220 = vmatpush1.msra.mxu0 0.0
  %221 = vmatprep.subr.mxu0 0.0
  %222 = vmatpush1.msra.mxu0 0.0
  %223 = vmatprep.subr.mxu0 0.0
  %224 = vmatpush1.msra.mxu0 0.0
  %225 = vmatprep.subr.mxu0 0.0
  %226 = vmatpush1.msra.mxu0 0.0
  %227 = vmatprep.subr.mxu0 0.0
  %228 = vmatpush1.msra.mxu0 0.0
  %229 = vmatprep.subr.mxu0 0.0
  %230 = vmatpush1.msra.mxu0 0.0
  %231 = vmatprep.subr.mxu0 0.0
  %232 = vmatpush1.msra.mxu0 0.0
  %233 = vmatprep.subr.mxu0 0.0
  %234 = vmatpush1.msra.mxu0 0.0
  %235 = vmatprep.subr.mxu0 0.0
  %236 = vmatpush1.msra.mxu0 0.0
  %237 = vmatprep.subr.mxu0 0.0
  %238 = vmatpush1.msra.mxu0 0.0
  %239 = vmatprep.subr.mxu0 0.0
  %240 = vmatpush1.msra.mxu0 0.0
  %241 = vmatprep.subr.mxu0 0.0
  %242 = vmatpush1.msra.mxu0 0.0
  %243 = vmatprep.subr.mxu0 0.0
  %244 = vmatpush1.msra.mxu0 0.0
  %245 = vmatprep.subr.mxu0 0.0
  %246 = vmatpush1.msra.mxu0 0.0
  %247 = vmatprep.subr.mxu0 0.0
  %248 = vmatpush1.msra.mxu0 0.0
  %249 = vmatprep.subr.mxu0 0.0
  %250 = vmatpush1.msra.mxu0 0.0
  %251 = vmatprep.subr.mxu0 0.0
  %252 = vmatpush1.msra.mxu0 0.0
  %253 = vmatprep.subr.mxu0 0.0
  %254 = vmatpush1.msra.mxu0 0.0
  %255 = vmatprep.mubr.f32.mxu0 0.0
  %256 = vmatmul.mubr.f32.gmra.mrb[0].mxu0 %v189
  %v257 = vpop.f32.mrb[0].mxu0
  %v258 = vadd.f32 %v186, %v257
  %v259 = vpop.f32.mrb[0].mxu0
  %260 = vdwg.mxu0
  %v261 = vmul.f32 %v258, 3.0
  %v262 = vtanh.pop %v261
  %v263 = vlaneseq
  %v264 = vshrl.u32 %v263, 7
  %v265 = vsub.s32 0, %v264
  %v266 = vrot.slane %v182, %v265
  %v268 = vsel %vm187, %v173, 0
  %270 = vmatprep.subr.mxu0 0.0
  %271 = vmatpush1.msra.mxu0 %v180
  %272 = vmatprep.subr.mxu0 0.0
  %273 = vmatpush1.msra.mxu0 %v181
  %274 = vmatprep.subr.mxu0 0.0
  %275 = vmatpush1.msra.mxu0 0.0
  %276 = vmatprep.subr.mxu0 0.0
  %277 = vmatpush1.msra.mxu0 0.0
  %278 = vmatprep.subr.mxu0 0.0
  %279 = vmatpush1.msra.mxu0 0.0
  %280 = vmatprep.subr.mxu0 0.0
  %281 = vmatpush1.msra.mxu0 0.0
  %282 = vmatprep.subr.mxu0 0.0
  %283 = vmatpush1.msra.mxu0 0.0
  %284 = vmatprep.subr.mxu0 0.0
  %285 = vmatpush1.msra.mxu0 0.0
  %286 = vmatprep.subr.mxu0 0.0
  %287 = vmatpush1.msra.mxu0 0.0
  %288 = vmatprep.subr.mxu0 0.0
  %289 = vmatpush1.msra.mxu0 0.0
  %290 = vmatprep.subr.mxu0 0.0
  %291 = vmatpush1.msra.mxu0 0.0
  %292 = vmatprep.subr.mxu0 0.0
  %293 = vmatpush1.msra.mxu0 0.0
  %294 = vmatprep.subr.mxu0 0.0
  %295 = vmatpush1.msra.mxu0 0.0
  %296 = vmatprep.subr.mxu0 0.0
  %297 = vmatpush1.msra.mxu0 0.0
  %298 = vmatprep.subr.mxu0 0.0
  %299 = vmatpush1.msra.mxu0 0.0
  %300 = vmatprep.subr.mxu0 0.0
  %301 = vmatpush1.msra.mxu0 0.0
  %302 = vmatprep.subr.mxu0 0.0
  %303 = vmatpush1.msra.mxu0 0.0
  %304 = vmatprep.subr.mxu0 0.0
  %305 = vmatpush1.msra.mxu0 0.0
  %306 = vmatprep.subr.mxu0 0.0
  %307 = vmatpush1.msra.mxu0 0.0
  %308 = vmatprep.subr.mxu0 0.0
  %309 = vmatpush1.msra.mxu0 0.0
  %310 = vmatprep.subr.mxu0 0.0
  %311 = vmatpush1.msra.mxu0 0.0
  %312 = vmatprep.subr.mxu0 0.0
  %313 = vmatpush1.msra.mxu0 0.0
  %314 = vmatprep.subr.mxu0 0.0
  %315 = vmatpush1.msra.mxu0 0.0
  %316 = vmatprep.subr.mxu0 0.0
  %317 = vmatpush1.msra.mxu0 0.0
  %318 = vmatprep.subr.mxu0 0.0
  %319 = vmatpush1.msra.mxu0 0.0
  %320 = vmatprep.subr.mxu0 0.0
  %321 = vmatpush1.msra.mxu0 0.0
  %322 = vmatprep.subr.mxu0 0.0
  %323 = vmatpush1.msra.mxu0 0.0
  %324 = vmatprep.subr.mxu0 0.0
  %325 = vmatpush1.msra.mxu0 0.0
  %326 = vmatprep.subr.mxu0 0.0
  %327 = vmatpush1.msra.mxu0 0.0
  %328 = vmatprep.subr.mxu0 0.0
  %329 = vmatpush1.msra.mxu0 0.0
  %330 = vmatprep.subr.mxu0 0.0
  %331 = vmatpush1.msra.mxu0 0.0
  %332 = vmatprep.subr.mxu0 0.0
  %333 = vmatpush1.msra.mxu0 0.0
  %334 = vmatprep.mubr.f32.mxu0 0.0
  %335 = vmatmul.mubr.f32.gmra.mrb[0].mxu0 %v268
  %v336 = vpop.f32.mrb[0].mxu0
  %v337 = vadd.f32 %v266, %v336
  %v338 = vpop.f32.mrb[0].mxu0
  %339 = vdwg.mxu0
  %v340 = vmul.f32 %v337, 3.0
  %v341 = vtanh.pop %v340
  %v343 = vsel %vm187, %v262, 0
  %v346 = vsel %vm187, %v341, 0
  %348 = vmatprep.subr.mxu0 0.0
  %349 = vmatpush1.xpose.msra.mxu0 %v346
  %350 = vmatprep.subr.mxu0 0.0
  %351 = vmatpush1.xpose.msra.mxu0 0.0
  %352 = vmatprep.subr.mxu0 0.0
  %353 = vmatpush1.xpose.msra.mxu0 0.0
  %354 = vmatprep.subr.mxu0 0.0
  %355 = vmatpush1.xpose.msra.mxu0 0.0
  %356 = vmatprep.subr.mxu0 0.0
  %357 = vmatpush1.xpose.msra.mxu0 0.0
  %358 = vmatprep.subr.mxu0 0.0
  %359 = vmatpush1.xpose.msra.mxu0 0.0
  %360 = vmatprep.subr.mxu0 0.0
  %361 = vmatpush1.xpose.msra.mxu0 0.0
  %362 = vmatprep.subr.mxu0 0.0
  %363 = vmatpush1.xpose.msra.mxu0 0.0
  %364 = vmatprep.subr.mxu0 0.0
  %365 = vmatpush1.xpose.msra.mxu0 0.0
  %366 = vmatprep.subr.mxu0 0.0
  %367 = vmatpush1.xpose.msra.mxu0 0.0
  %368 = vmatprep.subr.mxu0 0.0
  %369 = vmatpush1.xpose.msra.mxu0 0.0
  %370 = vmatprep.subr.mxu0 0.0
  %371 = vmatpush1.xpose.msra.mxu0 0.0
  %372 = vmatprep.subr.mxu0 0.0
  %373 = vmatpush1.xpose.msra.mxu0 0.0
  %374 = vmatprep.subr.mxu0 0.0
  %375 = vmatpush1.xpose.msra.mxu0 0.0
  %376 = vmatprep.subr.mxu0 0.0
  %377 = vmatpush1.xpose.msra.mxu0 0.0
  %378 = vmatprep.subr.mxu0 0.0
  %379 = vmatpush1.xpose.msra.mxu0 0.0
  %380 = vmatprep.subr.mxu0 0.0
  %381 = vmatpush1.xpose.msra.mxu0 0.0
  %382 = vmatprep.subr.mxu0 0.0
  %383 = vmatpush1.xpose.msra.mxu0 0.0
  %384 = vmatprep.subr.mxu0 0.0
  %385 = vmatpush1.xpose.msra.mxu0 0.0
  %386 = vmatprep.subr.mxu0 0.0
  %387 = vmatpush1.xpose.msra.mxu0 0.0
  %388 = vmatprep.subr.mxu0 0.0
  %389 = vmatpush1.xpose.msra.mxu0 0.0
  %390 = vmatprep.subr.mxu0 0.0
  %391 = vmatpush1.xpose.msra.mxu0 0.0
  %392 = vmatprep.subr.mxu0 0.0
  %393 = vmatpush1.xpose.msra.mxu0 0.0
  %394 = vmatprep.subr.mxu0 0.0
  %395 = vmatpush1.xpose.msra.mxu0 0.0
  %396 = vmatprep.subr.mxu0 0.0
  %397 = vmatpush1.xpose.msra.mxu0 0.0
  %398 = vmatprep.subr.mxu0 0.0
  %399 = vmatpush1.xpose.msra.mxu0 0.0
  %400 = vmatprep.subr.mxu0 0.0
  %401 = vmatpush1.xpose.msra.mxu0 0.0
  %402 = vmatprep.subr.mxu0 0.0
  %403 = vmatpush1.xpose.msra.mxu0 0.0
  %404 = vmatprep.subr.mxu0 0.0
  %405 = vmatpush1.xpose.msra.mxu0 0.0
  %406 = vmatprep.subr.mxu0 0.0
  %407 = vmatpush1.xpose.msra.mxu0 0.0
  %408 = vmatprep.subr.mxu0 0.0
  %409 = vmatpush1.xpose.msra.mxu0 0.0
  %410 = vmatprep.subr.mxu0 0.0
  %411 = vmatpush1.xpose.msra.mxu0 0.0
  %412 = vmatprep.mubr.f32.mxu0 0.0
  %413 = vmatmul.mubr.f32.gmra.mrb[0].mxu0 %v343
  %v414 = vpop.f32.mrb[0].mxu0
  %v415 = vadd.f32 0.0, %v414
  %v416 = vpop.f32.mrb[0].mxu0
  %417 = vdwg.mxu0
  %418 = vxpose.xlu0.b32.start [1/16] %v415, 128
  %419 = vxpose.xlu0.b32.cont [2/16] 0.0, 128
  %420 = vxpose.xlu0.b32.cont [3/16] 0.0, 128
  %421 = vxpose.xlu0.b32.cont [4/16] 0.0, 128
  %422 = vxpose.xlu0.b32.cont [5/16] 0.0, 128
  %423 = vxpose.xlu0.b32.cont [6/16] 0.0, 128
  %424 = vxpose.xlu0.b32.cont [7/16] 0.0, 128
  %425 = vxpose.xlu0.b32.cont [8/16] 0.0, 128
  %426 = vxpose.xlu0.b32.cont [9/16] 0.0, 128
  %427 = vxpose.xlu0.b32.cont [10/16] 0.0, 128
  %428 = vxpose.xlu0.b32.cont [11/16] 0.0, 128
  %429 = vxpose.xlu0.b32.cont [12/16] 0.0, 128
  %430 = vxpose.xlu0.b32.cont [13/16] 0.0, 128
  %431 = vxpose.xlu0.b32.cont [14/16] 0.0, 128
  %432 = vxpose.xlu0.b32.cont [15/16] 0.0, 128
  %433 = vxpose.xlu0.b32.end [16/16] 0.0, 128
  %v434 = vpop.trf.xlu0
  %v435 = vpop.trf.xlu0
  %v436 = vpop.trf.xlu0
  %v437 = vpop.trf.xlu0
  %v438 = vpop.trf.xlu0
  %v439 = vpop.trf.xlu0
  %v440 = vpop.trf.xlu0
  %v441 = vpop.trf.xlu0
  %v442 = vpop.trf.xlu0
  %v443 = vpop.trf.xlu0
  %v444 = vpop.trf.xlu0
  %v445 = vpop.trf.xlu0
  %v446 = vpop.trf.xlu0
  %v447 = vpop.trf.xlu0
  %v448 = vpop.trf.xlu0
  %v449 = vpop.trf.xlu0
  %v450 = vsub.f32 %v434, %v415
  %v451 = vmul.f32 %v450, 3.0
  %v452 = vtanh.pop %v451
  %v453 = vld [vmem:[%s3] sm:$0xff]
  %v455 = vsel %vm30, %v452, 0
  %457 = vmatprep.subr.mxu0 0.0
  %458 = vmatpush1.msra.mxu0 %v453
  %459 = vmatprep.subr.mxu0 0.0
  %460 = vmatpush1.msra.mxu0 0.0
  %461 = vmatprep.subr.mxu0 0.0
  %462 = vmatpush1.msra.mxu0 0.0
  %463 = vmatprep.subr.mxu0 0.0
  %464 = vmatpush1.msra.mxu0 0.0
  %465 = vmatprep.subr.mxu0 0.0
  %466 = vmatpush1.msra.mxu0 0.0
  %467 = vmatprep.subr.mxu0 0.0
  %468 = vmatpush1.msra.mxu0 0.0
  %469 = vmatprep.subr.mxu0 0.0
  %470 = vmatpush1.msra.mxu0 0.0
  %471 = vmatprep.subr.mxu0 0.0
  %472 = vmatpush1.msra.mxu0 0.0
  %473 = vmatprep.subr.mxu0 0.0
  %474 = vmatpush1.msra.mxu0 0.0
  %475 = vmatprep.subr.mxu0 0.0
  %476 = vmatpush1.msra.mxu0 0.0
  %477 = vmatprep.subr.mxu0 0.0
  %478 = vmatpush1.msra.mxu0 0.0
  %479 = vmatprep.subr.mxu0 0.0
  %480 = vmatpush1.msra.mxu0 0.0
  %481 = vmatprep.subr.mxu0 0.0
  %482 = vmatpush1.msra.mxu0 0.0
  %483 = vmatprep.subr.mxu0 0.0
  %484 = vmatpush1.msra.mxu0 0.0
  %485 = vmatprep.subr.mxu0 0.0
  %486 = vmatpush1.msra.mxu0 0.0
  %487 = vmatprep.subr.mxu0 0.0
  %488 = vmatpush1.msra.mxu0 0.0
  %489 = vmatprep.subr.mxu0 0.0
  %490 = vmatpush1.msra.mxu0 0.0
  %491 = vmatprep.subr.mxu0 0.0
  %492 = vmatpush1.msra.mxu0 0.0
  %493 = vmatprep.subr.mxu0 0.0
  %494 = vmatpush1.msra.mxu0 0.0
  %495 = vmatprep.subr.mxu0 0.0
  %496 = vmatpush1.msra.mxu0 0.0
  %497 = vmatprep.subr.mxu0 0.0
  %498 = vmatpush1.msra.mxu0 0.0
  %499 = vmatprep.subr.mxu0 0.0
  %500 = vmatpush1.msra.mxu0 0.0
  %501 = vmatprep.subr.mxu0 0.0
  %502 = vmatpush1.msra.mxu0 0.0
  %503 = vmatprep.subr.mxu0 0.0
  %504 = vmatpush1.msra.mxu0 0.0
  %505 = vmatprep.subr.mxu0 0.0
  %506 = vmatpush1.msra.mxu0 0.0
  %507 = vmatprep.subr.mxu0 0.0
  %508 = vmatpush1.msra.mxu0 0.0
  %509 = vmatprep.subr.mxu0 0.0
  %510 = vmatpush1.msra.mxu0 0.0
  %511 = vmatprep.subr.mxu0 0.0
  %512 = vmatpush1.msra.mxu0 0.0
  %513 = vmatprep.subr.mxu0 0.0
  %514 = vmatpush1.msra.mxu0 0.0
  %515 = vmatprep.subr.mxu0 0.0
  %516 = vmatpush1.msra.mxu0 0.0
  %517 = vmatprep.subr.mxu0 0.0
  %518 = vmatpush1.msra.mxu0 0.0
  %519 = vmatprep.subr.mxu0 0.0
  %520 = vmatpush1.msra.mxu0 0.0
  %521 = vmatprep.mubr.f32.mxu0 0.0
  %522 = vmatmul.mubr.f32.gmra.mrb[0].mxu0 %v455
  %v523 = vpop.f32.mrb[0].mxu0
  %v524 = vadd.f32 0.0, %v523
  %v525 = vpop.f32.mrb[0].mxu0
  %526 = vdwg.mxu0
  %v527 = vsel %vm30, %v524, -inf
  %528 = vmax.xlane.f32.xlu0 %v527
  %v529 = vpop.xlane.xlu0 %528
  %v530 = vsub.f32 %v524, %v529
  %v531 = vmul.f32 %v530, 1.442695
  %v532 = vpow.pop %v531
  %v533 = vsel %vm30, %v532, 0.0
  %534 = vadd.xlane.f32.xlu0 %v533
  %v535 = vpop.xlane.xlu0 %534
  %v536 = vrcp.pop %v535
  %v537 = vmul.f32 %v532, %v536
  %v538 = vld [vmem:[%s4] sm:$0xff]
  %539 = vxpose.xlu0.b32.start [1/16] %v538, 128
  %540 = vxpose.xlu0.b32.cont [2/16] 0.0, 128
  %541 = vxpose.xlu0.b32.cont [3/16] 0.0, 128
  %542 = vxpose.xlu0.b32.cont [4/16] 0.0, 128
  %543 = vxpose.xlu0.b32.cont [5/16] 0.0, 128
  %544 = vxpose.xlu0.b32.cont [6/16] 0.0, 128
  %545 = vxpose.xlu0.b32.cont [7/16] 0.0, 128
  %546 = vxpose.xlu0.b32.cont [8/16] 0.0, 128
  %547 = vxpose.xlu0.b32.cont [9/16] 0.0, 128
  %548 = vxpose.xlu0.b32.cont [10/16] 0.0, 128
  %549 = vxpose.xlu0.b32.cont [11/16] 0.0, 128
  %550 = vxpose.xlu0.b32.cont [12/16] 0.0, 128
  %551 = vxpose.xlu0.b32.cont [13/16] 0.0, 128
  %552 = vxpose.xlu0.b32.cont [14/16] 0.0, 128
  %553 = vxpose.xlu0.b32.cont [15/16] 0.0, 128
  %554 = vxpose.xlu0.b32.end [16/16] 0.0, 128
  %v555 = vpop.trf.xlu0
  %v556 = vpop.trf.xlu0
  %v557 = vpop.trf.xlu0
  %v558 = vpop.trf.xlu0
  %v559 = vpop.trf.xlu0
  %v560 = vpop.trf.xlu0
  %v561 = vpop.trf.xlu0
  %v562 = vpop.trf.xlu0
  %v563 = vpop.trf.xlu0
  %v564 = vpop.trf.xlu0
  %v565 = vpop.trf.xlu0
  %v566 = vpop.trf.xlu0
  %v567 = vpop.trf.xlu0
  %v568 = vpop.trf.xlu0
  %v569 = vpop.trf.xlu0
  %v570 = vpop.trf.xlu0
  %v572 = vsel %vm30, %v555, 0
  %v575 = vsel %vm30, %v556, 0
  %577 = vmatprep.subr.mxu0 0.0
  %578 = vmatpush1.msra.mxu0 %v537
  %579 = vmatprep.subr.mxu0 0.0
  %580 = vmatpush1.msra.mxu0 0.0
  %581 = vmatprep.subr.mxu0 0.0
  %582 = vmatpush1.msra.mxu0 0.0
  %583 = vmatprep.subr.mxu0 0.0
  %584 = vmatpush1.msra.mxu0 0.0
  %585 = vmatprep.subr.mxu0 0.0
  %586 = vmatpush1.msra.mxu0 0.0
  %587 = vmatprep.subr.mxu0 0.0
  %588 = vmatpush1.msra.mxu0 0.0
  %589 = vmatprep.subr.mxu0 0.0
  %590 = vmatpush1.msra.mxu0 0.0
  %591 = vmatprep.subr.mxu0 0.0
  %592 = vmatpush1.msra.mxu0 0.0
  %593 = vmatprep.subr.mxu0 0.0
  %594 = vmatpush1.msra.mxu0 0.0
  %595 = vmatprep.subr.mxu0 0.0
  %596 = vmatpush1.msra.mxu0 0.0
  %597 = vmatprep.subr.mxu0 0.0
  %598 = vmatpush1.msra.mxu0 0.0
  %599 = vmatprep.subr.mxu0 0.0
  %600 = vmatpush1.msra.mxu0 0.0
  %601 = vmatprep.subr.mxu0 0.0
  %602 = vmatpush1.msra.mxu0 0.0
  %603 = vmatprep.subr.mxu0 0.0
  %604 = vmatpush1.msra.mxu0 0.0
  %605 = vmatprep.subr.mxu0 0.0
  %606 = vmatpush1.msra.mxu0 0.0
  %607 = vmatprep.subr.mxu0 0.0
  %608 = vmatpush1.msra.mxu0 0.0
  %609 = vmatprep.subr.mxu0 0.0
  %610 = vmatpush1.msra.mxu0 0.0
  %611 = vmatprep.subr.mxu0 0.0
  %612 = vmatpush1.msra.mxu0 0.0
  %613 = vmatprep.subr.mxu0 0.0
  %614 = vmatpush1.msra.mxu0 0.0
  %615 = vmatprep.subr.mxu0 0.0
  %616 = vmatpush1.msra.mxu0 0.0
  %617 = vmatprep.subr.mxu0 0.0
  %618 = vmatpush1.msra.mxu0 0.0
  %619 = vmatprep.subr.mxu0 0.0
  %620 = vmatpush1.msra.mxu0 0.0
  %621 = vmatprep.subr.mxu0 0.0
  %622 = vmatpush1.msra.mxu0 0.0
  %623 = vmatprep.subr.mxu0 0.0
  %624 = vmatpush1.msra.mxu0 0.0
  %625 = vmatprep.subr.mxu0 0.0
  %626 = vmatpush1.msra.mxu0 0.0
  %627 = vmatprep.subr.mxu0 0.0
  %628 = vmatpush1.msra.mxu0 0.0
  %629 = vmatprep.subr.mxu0 0.0
  %630 = vmatpush1.msra.mxu0 0.0
  %631 = vmatprep.subr.mxu0 0.0
  %632 = vmatpush1.msra.mxu0 0.0
  %633 = vmatprep.subr.mxu0 0.0
  %634 = vmatpush1.msra.mxu0 0.0
  %635 = vmatprep.subr.mxu0 0.0
  %636 = vmatpush1.msra.mxu0 0.0
  %637 = vmatprep.subr.mxu0 0.0
  %638 = vmatpush1.msra.mxu0 0.0
  %639 = vmatprep.subr.mxu0 0.0
  %640 = vmatpush1.msra.mxu0 0.0
  %641 = vmatprep.mubr.f32.mxu0 0.0
  %642 = vmatmul.mubr.f32.gmra.mrb[0].mxu0 %v572
  %v643 = vpop.f32.mrb[0].mxu0
  %v644 = vadd.f32 0.0, %v643
  %v645 = vpop.f32.mrb[0].mxu0
  %646 = vmatprep.mubr.f32.mxu0 0.0
  %647 = vmatmul.mubr.f32.gmra.mrb[0].mxu0 %v575
  %v648 = vpop.f32.mrb[0].mxu0
  %v649 = vadd.f32 0.0, %v648
  %v650 = vpop.f32.mrb[0].mxu0
  %651 = vdwg.mxu0
  %652 = vst.msk [vmem:[%s5] sm:$0xff] %vm30, %v644
  %653 = vst.msk [vmem:[%s5 + $0x8] sm:$0xff] %vm30, %v649
  %s654 = scalar_lea.vmem %s3, 8
  %v655 = vld [vmem:[%s654] sm:$0xff]
  %656 = vmatprep.subr.mxu0 0.0
  %657 = vmatpush1.msra.mxu0 %v655
  %658 = vmatprep.subr.mxu0 0.0
  %659 = vmatpush1.msra.mxu0 0.0
  %660 = vmatprep.subr.mxu0 0.0
  %661 = vmatpush1.msra.mxu0 0.0
  %662 = vmatprep.subr.mxu0 0.0
  %663 = vmatpush1.msra.mxu0 0.0
  %664 = vmatprep.subr.mxu0 0.0
  %665 = vmatpush1.msra.mxu0 0.0
  %666 = vmatprep.subr.mxu0 0.0
  %667 = vmatpush1.msra.mxu0 0.0
  %668 = vmatprep.subr.mxu0 0.0
  %669 = vmatpush1.msra.mxu0 0.0
  %670 = vmatprep.subr.mxu0 0.0
  %671 = vmatpush1.msra.mxu0 0.0
  %672 = vmatprep.subr.mxu0 0.0
  %673 = vmatpush1.msra.mxu0 0.0
  %674 = vmatprep.subr.mxu0 0.0
  %675 = vmatpush1.msra.mxu0 0.0
  %676 = vmatprep.subr.mxu0 0.0
  %677 = vmatpush1.msra.mxu0 0.0
  %678 = vmatprep.subr.mxu0 0.0
  %679 = vmatpush1.msra.mxu0 0.0
  %680 = vmatprep.subr.mxu0 0.0
  %681 = vmatpush1.msra.mxu0 0.0
  %682 = vmatprep.subr.mxu0 0.0
  %683 = vmatpush1.msra.mxu0 0.0
  %684 = vmatprep.subr.mxu0 0.0
  %685 = vmatpush1.msra.mxu0 0.0
  %686 = vmatprep.subr.mxu0 0.0
  %687 = vmatpush1.msra.mxu0 0.0
  %688 = vmatprep.subr.mxu0 0.0
  %689 = vmatpush1.msra.mxu0 0.0
  %690 = vmatprep.subr.mxu0 0.0
  %691 = vmatpush1.msra.mxu0 0.0
  %692 = vmatprep.subr.mxu0 0.0
  %693 = vmatpush1.msra.mxu0 0.0
  %694 = vmatprep.subr.mxu0 0.0
  %695 = vmatpush1.msra.mxu0 0.0
  %696 = vmatprep.subr.mxu0 0.0
  %697 = vmatpush1.msra.mxu0 0.0
  %698 = vmatprep.subr.mxu0 0.0
  %699 = vmatpush1.msra.mxu0 0.0
  %700 = vmatprep.subr.mxu0 0.0
  %701 = vmatpush1.msra.mxu0 0.0
  %702 = vmatprep.subr.mxu0 0.0
  %703 = vmatpush1.msra.mxu0 0.0
  %704 = vmatprep.subr.mxu0 0.0
  %705 = vmatpush1.msra.mxu0 0.0
  %706 = vmatprep.subr.mxu0 0.0
  %707 = vmatpush1.msra.mxu0 0.0
  %708 = vmatprep.subr.mxu0 0.0
  %709 = vmatpush1.msra.mxu0 0.0
  %710 = vmatprep.subr.mxu0 0.0
  %711 = vmatpush1.msra.mxu0 0.0
  %712 = vmatprep.subr.mxu0 0.0
  %713 = vmatpush1.msra.mxu0 0.0
  %714 = vmatprep.subr.mxu0 0.0
  %715 = vmatpush1.msra.mxu0 0.0
  %716 = vmatprep.subr.mxu0 0.0
  %717 = vmatpush1.msra.mxu0 0.0
  %718 = vmatprep.subr.mxu0 0.0
  %719 = vmatpush1.msra.mxu0 0.0
  %720 = vmatprep.mubr.f32.mxu0 0.0
  %721 = vmatmul.mubr.f32.gmra.mrb[0].mxu0 %v455
  %v722 = vpop.f32.mrb[0].mxu0
  %v723 = vadd.f32 0.0, %v722
  %v724 = vpop.f32.mrb[0].mxu0
  %725 = vdwg.mxu0
  %v726 = vsel %vm30, %v723, -inf
  %727 = vmax.xlane.f32.xlu0 %v726
  %v728 = vpop.xlane.xlu0 %727
  %v729 = vsub.f32 %v723, %v728
  %v730 = vmul.f32 %v729, 1.442695
  %v731 = vpow.pop %v730
  %v732 = vsel %vm30, %v731, 0.0
  %733 = vadd.xlane.f32.xlu0 %v732
  %v734 = vpop.xlane.xlu0 %733
  %v735 = vrcp.pop %v734
  %v736 = vmul.f32 %v731, %v735
  %s737 = scalar_lea.vmem %s4, 8
  %v738 = vld [vmem:[%s737] sm:$0xff]
  %739 = vxpose.xlu0.b32.start [1/16] %v738, 128
  %740 = vxpose.xlu0.b32.cont [2/16] 0.0, 128
  %741 = vxpose.xlu0.b32.cont [3/16] 0.0, 128
  %742 = vxpose.xlu0.b32.cont [4/16] 0.0, 128
  %743 = vxpose.xlu0.b32.cont [5/16] 0.0, 128
  %744 = vxpose.xlu0.b32.cont [6/16] 0.0, 128
  %745 = vxpose.xlu0.b32.cont [7/16] 0.0, 128
  %746 = vxpose.xlu0.b32.cont [8/16] 0.0, 128
  %747 = vxpose.xlu0.b32.cont [9/16] 0.0, 128
  %748 = vxpose.xlu0.b32.cont [10/16] 0.0, 128
  %749 = vxpose.xlu0.b32.cont [11/16] 0.0, 128
  %750 = vxpose.xlu0.b32.cont [12/16] 0.0, 128
  %751 = vxpose.xlu0.b32.cont [13/16] 0.0, 128
  %752 = vxpose.xlu0.b32.cont [14/16] 0.0, 128
  %753 = vxpose.xlu0.b32.cont [15/16] 0.0, 128
  %754 = vxpose.xlu0.b32.end [16/16] 0.0, 128
  %v755 = vpop.trf.xlu0
  %v756 = vpop.trf.xlu0
  %v757 = vpop.trf.xlu0
  %v758 = vpop.trf.xlu0
  %v759 = vpop.trf.xlu0
  %v760 = vpop.trf.xlu0
  %v761 = vpop.trf.xlu0
  %v762 = vpop.trf.xlu0
  %v763 = vpop.trf.xlu0
  %v764 = vpop.trf.xlu0
  %v765 = vpop.trf.xlu0
  %v766 = vpop.trf.xlu0
  %v767 = vpop.trf.xlu0
  %v768 = vpop.trf.xlu0
  %v769 = vpop.trf.xlu0
  %v770 = vpop.trf.xlu0
  %v772 = vsel %vm30, %v755, 0
  %v775 = vsel %vm30, %v756, 0
  %777 = vmatprep.subr.mxu0 0.0
  %778 = vmatpush1.msra.mxu0 %v736
  %779 = vmatprep.subr.mxu0 0.0
  %780 = vmatpush1.msra.mxu0 0.0
  %781 = vmatprep.subr.mxu0 0.0
  %782 = vmatpush1.msra.mxu0 0.0
  %783 = vmatprep.subr.mxu0 0.0
  %784 = vmatpush1.msra.mxu0 0.0
  %785 = vmatprep.subr.mxu0 0.0
  %786 = vmatpush1.msra.mxu0 0.0
  %787 = vmatprep.subr.mxu0 0.0
  %788 = vmatpush1.msra.mxu0 0.0
  %789 = vmatprep.subr.mxu0 0.0
  %790 = vmatpush1.msra.mxu0 0.0
  %791 = vmatprep.subr.mxu0 0.0
  %792 = vmatpush1.msra.mxu0 0.0
  %793 = vmatprep.subr.mxu0 0.0
  %794 = vmatpush1.msra.mxu0 0.0
  %795 = vmatprep.subr.mxu0 0.0
  %796 = vmatpush1.msra.mxu0 0.0
  %797 = vmatprep.subr.mxu0 0.0
  %798 = vmatpush1.msra.mxu0 0.0
  %799 = vmatprep.subr.mxu0 0.0
  %800 = vmatpush1.msra.mxu0 0.0
  %801 = vmatprep.subr.mxu0 0.0
  %802 = vmatpush1.msra.mxu0 0.0
  %803 = vmatprep.subr.mxu0 0.0
  %804 = vmatpush1.msra.mxu0 0.0
  %805 = vmatprep.subr.mxu0 0.0
  %806 = vmatpush1.msra.mxu0 0.0
  %807 = vmatprep.subr.mxu0 0.0
  %808 = vmatpush1.msra.mxu0 0.0
  %809 = vmatprep.subr.mxu0 0.0
  %810 = vmatpush1.msra.mxu0 0.0
  %811 = vmatprep.subr.mxu0 0.0
  %812 = vmatpush1.msra.mxu0 0.0
  %813 = vmatprep.subr.mxu0 0.0
  %814 = vmatpush1.msra.mxu0 0.0
  %815 = vmatprep.subr.mxu0 0.0
  %816 = vmatpush1.msra.mxu0 0.0
  %817 = vmatprep.subr.mxu0 0.0
  %818 = vmatpush1.msra.mxu0 0.0
  %819 = vmatprep.subr.mxu0 0.0
  %820 = vmatpush1.msra.mxu0 0.0
  %821 = vmatprep.subr.mxu0 0.0
  %822 = vmatpush1.msra.mxu0 0.0
  %823 = vmatprep.subr.mxu0 0.0
  %824 = vmatpush1.msra.mxu0 0.0
  %825 = vmatprep.subr.mxu0 0.0
  %826 = vmatpush1.msra.mxu0 0.0
  %827 = vmatprep.subr.mxu0 0.0
  %828 = vmatpush1.msra.mxu0 0.0
  %829 = vmatprep.subr.mxu0 0.0
  %830 = vmatpush1.msra.mxu0 0.0
  %831 = vmatprep.subr.mxu0 0.0
  %832 = vmatpush1.msra.mxu0 0.0
  %833 = vmatprep.subr.mxu0 0.0
  %834 = vmatpush1.msra.mxu0 0.0
  %835 = vmatprep.subr.mxu0 0.0
  %836 = vmatpush1.msra.mxu0 0.0
  %837 = vmatprep.subr.mxu0 0.0
  %838 = vmatpush1.msra.mxu0 0.0
  %839 = vmatprep.subr.mxu0 0.0
  %840 = vmatpush1.msra.mxu0 0.0
  %841 = vmatprep.mubr.f32.mxu0 0.0
  %842 = vmatmul.mubr.f32.gmra.mrb[0].mxu0 %v772
  %v843 = vpop.f32.mrb[0].mxu0
  %v844 = vadd.f32 0.0, %v843
  %v845 = vpop.f32.mrb[0].mxu0
  %846 = vmatprep.mubr.f32.mxu0 0.0
  %847 = vmatmul.mubr.f32.gmra.mrb[0].mxu0 %v775
  %v848 = vpop.f32.mrb[0].mxu0
  %v849 = vadd.f32 0.0, %v848
  %v850 = vpop.f32.mrb[0].mxu0
  %851 = vdwg.mxu0
  %s852 = scalar_lea.vmem %s5, 16
  %853 = vst.msk [vmem:[%s852] sm:$0xff] %vm30, %v844
  %854 = vst.msk [vmem:[%s852 + $0x8] sm:$0xff] %vm30, %v849
  // Predicated region
  $region22: #{tpu_custom_call.1} parent=0 // pred_check
    _
  $region23: #{tpu_custom_call.1} parent=0 // pred_check_branch
    %856 = sbr.rel (0) target = $region25
  $region24: #{tpu_custom_call.1} parent=0 // pred_region
    _
  $region25: #{tpu_custom_call.1} parent=0 // pred_fallthru
    _
  // Predicated region
  $region26: #{tpu_custom_call.1} parent=0 // pred_check
    _
  $region27: #{tpu_custom_call.1} parent=0 // pred_check_branch
    %858 = sbr.rel (0) target = $region29
  $region28: #{tpu_custom_call.1} parent=0 // pred_region
    _
  $region29: #{tpu_custom_call.1} parent=0 // pred_fallthru
    _

</llo_original>
